<compile_context>
chip_gen: v6e
topology: v6e:2x2x1
jax: 0.10.0
libtpu: 0.0.40
codegen_flags: <defaults>
</compile_context>

<pallas_src>
import functools
import random

import jax
import jax.numpy as jnp
from jax.experimental import pallas as pl
from jax.experimental.pallas import tpu as pltpu

LANE = 128      # TPU lane width: matmul feature dims are zero-padded to this.
ROW = 16        # bf16 sublane packing: batch rows rounded to multiples of 16.
MAX_TILE = 256  # max rows per grid step (keeps >=2 steps for mid/large batches).


def _round_up(n, m):
    return ((n + m - 1) // m) * m


def _cdiv(a, b):
    return -(-a // b)


def dynamicnet_kernel(x_ref, w_in_ref, b_in_ref, w_h_ref, b_h_ref,
                      w_out_ref, b_out_ref, o_ref, *, n_hidden):
    # Input layer: the f32 x tile is cast to bf16 in-kernel (no wrapper-side
    # pad/cast pass over HBM); MXU accumulates in f32, the bias + ReLU epilogue
    # runs in bf16 with an implicit (1, Hp) bias broadcast, so h stays bf16
    # between layers (half the live vregs, no separate casts before each dot).
    x = x_ref[...].astype(jnp.bfloat16)
    acc = jnp.dot(x, w_in_ref[...], preferred_element_type=jnp.float32)
    h = jnp.maximum(acc.astype(jnp.bfloat16) + b_in_ref[...], 0)

    # Dynamic number of hidden layers (same weights reused), ReLU each time.
    # Weight / bias loads are hoisted out of the statically-unrolled loop.
    if n_hidden > 0:
        w_h = w_h_ref[...]
        b_h = b_h_ref[...]
        for _ in range(n_hidden):
            acc = jnp.dot(h, w_h, preferred_element_type=jnp.float32)
            h = jnp.maximum(acc.astype(jnp.bfloat16) + b_h, 0)

    # Output layer (no activation).  Padded lanes carry zeros and are sliced
    # off in the wrapper; the store is a lane-dense 128-wide bf16 tile
    # (unmasked vst).
    y = jnp.dot(h, w_out_ref[...], preferred_element_type=jnp.float32)
    o_ref[...] = (y + b_out_ref[...]).astype(o_ref.dtype)


def prepare_params(params, D_in, H, D_out):
    """One-time layout prep: transpose PyTorch (out, in) weights to (in, out),
    zero-pad the 'out' feature dims to multiples of 128 lanes, cast matmul
    operands and ReLU-layer biases to bf16 (output bias stays f32)."""
    hp = _round_up(H, LANE)
    dop = _round_up(D_out, LANE)

    def pad2(a, rows, cols):
        return jnp.pad(a, ((0, rows - a.shape[0]), (0, cols - a.shape[1])))

    w_in_t = pad2(params["w_in"].T, D_in, hp).astype(jnp.bfloat16)    # (D_in, Hp)
    w_h_t = pad2(params["w_h"].T, hp, hp).astype(jnp.bfloat16)        # (Hp, Hp)
    w_out_t = pad2(params["w_out"].T, hp, dop).astype(jnp.bfloat16)   # (Hp, Dop)
    b_in = jnp.pad(params["b_in"], (0, hp - H)).reshape(1, hp).astype(jnp.bfloat16)
    b_h = jnp.pad(params["b_h"], (0, hp - H)).reshape(1, hp).astype(jnp.bfloat16)
    b_out = jnp.pad(params["b_out"], (0, dop - D_out)).reshape(1, dop).astype(jnp.float32)
    return {"w_in_t": w_in_t, "b_in": b_in,
            "w_h_t": w_h_t, "b_h": b_h,
            "w_out_t": w_out_t, "b_out": b_out,
            "dims": (D_in, H, D_out), "padded": (D_in, hp, dop)}


def dynamicnet_forward(x, prepared, n_hidden):
    """x: (N, D_in) float32. prepared: output of prepare_params. n_hidden: host int."""
    N, D_in = x.shape
    _, Hp, D_out_p = prepared["padded"]
    D_out = prepared["dims"][2]

    # Batch tiling: rows rounded to 16 (bf16 packing); the tile size is derived
    # from the number of tiles so mid/large batches get >= 2 grid steps
    # (pipelining + v7x megacore) without a tail-padding cliff.
    n_rows = _round_up(N, ROW)
    num_tiles = max(2, _cdiv(n_rows, MAX_TILE)) if n_rows >= 2 * ROW else 1
    tile_n = _round_up(_cdiv(n_rows, num_tiles), ROW)
    n_pad = tile_n * num_tiles

    # Only the batch dim is padded; x stays f32 with its natural D_in minor dim
    # (block spans the full minor dim -> contiguous DMA).  bf16 cast is in-kernel.
    x_p = jnp.pad(x, ((0, n_pad - N), (0, 0)))

    grid = (num_tiles,)
    kernel = functools.partial(dynamicnet_kernel, n_hidden=n_hidden)

    # Constant index_map -> weight/bias blocks stay VMEM-resident across the
    # grid.  (pipeline_mode=pl.Buffered(1) would halve their ~100 KiB of
    # double-buffered VMEM, but that is negligible at Hp=128, so omitted.)
    const = lambda shape: pl.BlockSpec(shape, lambda i: (0, 0))

    param_keys = ("w_in_t", "b_in", "w_h_t", "b_h", "w_out_t", "b_out")
    flops = 2 * n_pad * (D_in * Hp + n_hidden * Hp * Hp + Hp * D_out_p)
    bytes_accessed = (n_pad * D_in * 4           # f32 x read (unpadded lanes)
                      + n_pad * D_out_p * 2      # bf16 padded output write
                      + sum(int(prepared[k].size) * prepared[k].dtype.itemsize
                            for k in param_keys))

    out = pl.pallas_call(
        kernel,
        out_shape=jax.ShapeDtypeStruct((n_pad, D_out_p), jnp.bfloat16),
        grid=grid,
        in_specs=[
            pl.BlockSpec((tile_n, D_in), lambda i: (i, 0)),   # x tiles, f32, unpadded lanes
            const((D_in, Hp)),
            const((1, Hp)),
            const((Hp, Hp)),
            const((1, Hp)),
            const((Hp, D_out_p)),
            const((1, D_out_p)),
        ],
        out_specs=pl.BlockSpec((tile_n, D_out_p), lambda i: (i, 0)),
        compiler_params=pltpu.CompilerParams(
            dimension_semantics=("parallel",),   # batch shards across TCs on v7x
            vmem_limit_bytes=8 << 20),           # ~10x real footprint; v7x-safe
        cost_estimate=pl.CostEstimate(flops=flops, transcendentals=0,
                                      bytes_accessed=bytes_accessed),
    )(x_p, prepared["w_in_t"], prepared["b_in"], prepared["w_h_t"],
      prepared["b_h"], prepared["w_out_t"], prepared["b_out"])

    return out[:N, :D_out].astype(jnp.float32)


def init_params(key, D_in, H, D_out):
    """Deterministic PyTorch-nn.Linear-style init: U(-1/sqrt(fan_in), 1/sqrt(fan_in))."""
    ks = jax.random.split(key, 6)

    def lin(kw, kb, fan_in, fan_out):
        bound = 1.0 / jnp.sqrt(fan_in)
        w = jax.random.uniform(kw, (fan_out, fan_in), jnp.float32, -bound, bound)
        b = jax.random.uniform(kb, (fan_out,), jnp.float32, -bound, bound)
        return w, b

    w_in, b_in = lin(ks[0], ks[1], D_in, H)
    w_h, b_h = lin(ks[2], ks[3], H, H)
    w_out, b_out = lin(ks[4], ks[5], H, D_out)
    return {"w_in": w_in, "b_in": b_in,
            "w_h": w_h, "b_h": b_h,
            "w_out": w_out, "b_out": b_out}


def reference_forward_f32(x, params, n_hidden):
    h = jnp.maximum(x @ params["w_in"].T + params["b_in"], 0.0)
    for _ in range(n_hidden):
        h = jnp.maximum(h @ params["w_h"].T + params["b_h"], 0.0)
    return h @ params["w_out"].T + params["b_out"]


def reference_forward_bf16(x, params, n_hidden):
    """Mirrors the kernel's precision: bf16 matmul operands, f32 MXU
    accumulation, bf16 bias-add/ReLU epilogue, bf16 output store."""
    bf16, f32 = jnp.bfloat16, jnp.float32

    def dot(a, w):
        return jnp.dot(a.astype(bf16), w.T.astype(bf16),
                       preferred_element_type=f32)

    h = jnp.maximum(dot(x, params["w_in"]).astype(bf16)
                    + params["b_in"].astype(bf16), 0)
    for _ in range(n_hidden):
        h = jnp.maximum(dot(h, params["w_h"]).astype(bf16)
                        + params["b_h"].astype(bf16), 0)
    y = dot(h, params["w_out"]) + params["b_out"]
    return y.astype(bf16).astype(f32)


if __name__ == "__main__":
    # Small shapes consistent with the module: batch N=8, D_in=16, H=32, D_out=4.
    N, D_in, H, D_out = 8, 16, 32, 4

    key = jax.random.PRNGKey(0)
    kx, kp = jax.random.split(key)
    x = jax.random.normal(kx, (N, D_in), jnp.float32)
    params = init_params(kp, D_in, H, D_out)
    prepared = prepare_params(params, D_in, H, D_out)   # one-time layout prep

    # Dynamic control flow: depth drawn on the host, deterministically seeded
    # (same host-side Python-int semantics as the PyTorch module).
    random.seed(0)
    n_hidden = random.randint(0, 3)

    y = dynamicnet_forward(x, prepared, n_hidden)
    y = jax.block_until_ready(y)

    y_ref_bf16 = reference_forward_bf16(x, params, n_hidden)
    y_ref_f32 = reference_forward_f32(x, params, n_hidden)

    assert y.shape == (N, D_out)
    assert jnp.allclose(y, y_ref_bf16, atol=2e-2, rtol=2e-2), \
        "mismatch vs bf16-precision reference"
    assert jnp.allclose(y, y_ref_f32, atol=1e-1, rtol=1e-1), \
        "mismatch vs f32 reference"

    print("KERNEL_OK")
</pallas_src>

<mosaic_0001>
module attributes {stable_mosaic.version = 11 : i64} {
  func.func @dynamicnet_kernel(%arg0: i32, %arg1: memref<16x16xf32, #tpu.memory_space<vmem>>, %arg2: memref<16x128xbf16, #tpu.memory_space<vmem>>, %arg3: memref<1x128xbf16, #tpu.memory_space<vmem>>, %arg4: memref<128x128xbf16, #tpu.memory_space<vmem>>, %arg5: memref<1x128xbf16, #tpu.memory_space<vmem>>, %arg6: memref<128x128xbf16, #tpu.memory_space<vmem>>, %arg7: memref<1x128xf32, #tpu.memory_space<vmem>>, %arg8: memref<16x128xbf16, #tpu.memory_space<vmem>>) attributes {dimension_semantics = [#tpu.dimension_semantics<parallel>], iteration_bounds = array<i64: 1>, scalar_prefetch = 0 : i64, scratch_operands = 0 : i64, tpu.core_type = #tpu.core_type<tc>, window_params = [{transform_indices = @transform_0, window_bounds = array<i64: 16, 16>}, {pipeline_mode = #tpu.pipeline_mode<synchronous>, transform_indices = @transform_1, window_bounds = array<i64: 16, 128>}, {pipeline_mode = #tpu.pipeline_mode<synchronous>, transform_indices = @transform_2, window_bounds = array<i64: 1, 128>}, {pipeline_mode = #tpu.pipeline_mode<synchronous>, transform_indices = @transform_3, window_bounds = array<i64: 128, 128>}, {pipeline_mode = #tpu.pipeline_mode<synchronous>, transform_indices = @transform_4, window_bounds = array<i64: 1, 128>}, {pipeline_mode = #tpu.pipeline_mode<synchronous>, transform_indices = @transform_5, window_bounds = array<i64: 128, 128>}, {pipeline_mode = #tpu.pipeline_mode<synchronous>, transform_indices = @transform_6, window_bounds = array<i64: 1, 128>}, {transform_indices = @transform_7, window_bounds = array<i64: 16, 128>}]} {
    %c0 = arith.constant 0 : index
    %c0_0 = arith.constant 0 : index
    %0 = vector.load %arg1[%c0, %c0_0] : memref<16x16xf32, #tpu.memory_space<vmem>>, vector<16x16xf32>
    %1 = arith.truncf %0 : vector<16x16xf32> to vector<16x16xbf16>
    %c0_1 = arith.constant 0 : index
    %c0_2 = arith.constant 0 : index
    %2 = vector.load %arg2[%c0_1, %c0_2] : memref<16x128xbf16, #tpu.memory_space<vmem>>, vector<16x128xbf16>
    %cst = arith.constant dense<0.000000e+00> : vector<16x128xf32>
    %3 = tpu.matmul %1, %2, %cst {dimension_numbers = #tpu.dot_dimension_numbers<[1], [0], [0], [1], [0, 0, 1, 1], [], []>} : vector<16x16xbf16>, vector<16x128xbf16>, vector<16x128xf32> -> vector<16x128xf32>
    %4 = arith.truncf %3 : vector<16x128xf32> to vector<16x128xbf16>
    %c0_3 = arith.constant 0 : index
    %c0_4 = arith.constant 0 : index
    %5 = vector.load %arg3[%c0_3, %c0_4] : memref<1x128xbf16, #tpu.memory_space<vmem>>, vector<1x128xbf16>
    %6 = vector.broadcast %5 : vector<1x128xbf16> to vector<16x128xbf16>
    %7 = arith.addf %4, %6 : vector<16x128xbf16>
    %cst_5 = arith.constant 0.000000e+00 : bf16
    %8 = vector.broadcast %cst_5 : bf16 to vector<16x128xbf16>
    %9 = arith.maximumf %7, %8 : vector<16x128xbf16>
    %c0_6 = arith.constant 0 : index
    %c0_7 = arith.constant 0 : index
    %10 = vector.load %arg4[%c0_6, %c0_7] : memref<128x128xbf16, #tpu.memory_space<vmem>>, vector<128x128xbf16>
    %c0_8 = arith.constant 0 : index
    %c0_9 = arith.constant 0 : index
    %11 = vector.load %arg5[%c0_8, %c0_9] : memref<1x128xbf16, #tpu.memory_space<vmem>>, vector<1x128xbf16>
    %cst_10 = arith.constant dense<0.000000e+00> : vector<16x128xf32>
    %12 = tpu.matmul %9, %10, %cst_10 {dimension_numbers = #tpu.dot_dimension_numbers<[1], [0], [0], [1], [0, 0, 1, 1], [], []>} : vector<16x128xbf16>, vector<128x128xbf16>, vector<16x128xf32> -> vector<16x128xf32>
    %13 = arith.truncf %12 : vector<16x128xf32> to vector<16x128xbf16>
    %14 = vector.broadcast %11 : vector<1x128xbf16> to vector<16x128xbf16>
    %15 = arith.addf %13, %14 : vector<16x128xbf16>
    %cst_11 = arith.constant 0.000000e+00 : bf16
    %16 = vector.broadcast %cst_11 : bf16 to vector<16x128xbf16>
    %17 = arith.maximumf %15, %16 : vector<16x128xbf16>
    %cst_12 = arith.constant dense<0.000000e+00> : vector<16x128xf32>
    %18 = tpu.matmul %17, %10, %cst_12 {dimension_numbers = #tpu.dot_dimension_numbers<[1], [0], [0], [1], [0, 0, 1, 1], [], []>} : vector<16x128xbf16>, vector<128x128xbf16>, vector<16x128xf32> -> vector<16x128xf32>
    %19 = arith.truncf %18 : vector<16x128xf32> to vector<16x128xbf16>
    %20 = vector.broadcast %11 : vector<1x128xbf16> to vector<16x128xbf16>
    %21 = arith.addf %19, %20 : vector<16x128xbf16>
    %cst_13 = arith.constant 0.000000e+00 : bf16
    %22 = vector.broadcast %cst_13 : bf16 to vector<16x128xbf16>
    %23 = arith.maximumf %21, %22 : vector<16x128xbf16>
    %cst_14 = arith.constant dense<0.000000e+00> : vector<16x128xf32>
    %24 = tpu.matmul %23, %10, %cst_14 {dimension_numbers = #tpu.dot_dimension_numbers<[1], [0], [0], [1], [0, 0, 1, 1], [], []>} : vector<16x128xbf16>, vector<128x128xbf16>, vector<16x128xf32> -> vector<16x128xf32>
    %25 = arith.truncf %24 : vector<16x128xf32> to vector<16x128xbf16>
    %26 = vector.broadcast %11 : vector<1x128xbf16> to vector<16x128xbf16>
    %27 = arith.addf %25, %26 : vector<16x128xbf16>
    %cst_15 = arith.constant 0.000000e+00 : bf16
    %28 = vector.broadcast %cst_15 : bf16 to vector<16x128xbf16>
    %29 = arith.maximumf %27, %28 : vector<16x128xbf16>
    %c0_16 = arith.constant 0 : index
    %c0_17 = arith.constant 0 : index
    %30 = vector.load %arg6[%c0_16, %c0_17] : memref<128x128xbf16, #tpu.memory_space<vmem>>, vector<128x128xbf16>
    %cst_18 = arith.constant dense<0.000000e+00> : vector<16x128xf32>
    %31 = tpu.matmul %29, %30, %cst_18 {dimension_numbers = #tpu.dot_dimension_numbers<[1], [0], [0], [1], [0, 0, 1, 1], [], []>} : vector<16x128xbf16>, vector<128x128xbf16>, vector<16x128xf32> -> vector<16x128xf32>
    %c0_19 = arith.constant 0 : index
    %c0_20 = arith.constant 0 : index
    %32 = vector.load %arg7[%c0_19, %c0_20] : memref<1x128xf32, #tpu.memory_space<vmem>>, vector<1x128xf32>
    %33 = vector.broadcast %32 : vector<1x128xf32> to vector<16x128xf32>
    %34 = arith.addf %31, %33 : vector<16x128xf32>
    %35 = arith.truncf %34 : vector<16x128xf32> to vector<16x128xbf16>
    %c0_21 = arith.constant 0 : index
    %c0_22 = arith.constant 0 : index
    %36 = vector.load %arg8[%c0_21, %c0_22] : memref<16x128xbf16, #tpu.memory_space<vmem>>, vector<16x128xbf16>
    tpu.vector_store %arg8[%c0_21, %c0_22], %35 {strides = array<i32>} : memref<16x128xbf16, #tpu.memory_space<vmem>>, vector<16x128xbf16>,
    return
  }
  func.func @transform_0(%arg0: i32) -> (i32, i32) {
    %c0_i32 = arith.constant 0 : i32
    %c0_i32_0 = arith.constant 0 : i32
    return %arg0, %c0_i32 : i32, i32
  }
  func.func @transform_1(%arg0: i32) -> (i32, i32) {
    %c0_i32 = arith.constant 0 : i32
    %c0_i32_0 = arith.constant 0 : i32
    %c0_i32_1 = arith.constant 0 : i32
    return %c0_i32, %c0_i32_0 : i32, i32
  }
  func.func @transform_2(%arg0: i32) -> (i32, i32) {
    %c0_i32 = arith.constant 0 : i32
    %c0_i32_0 = arith.constant 0 : i32
    %c0_i32_1 = arith.constant 0 : i32
    return %c0_i32, %c0_i32_0 : i32, i32
  }
  func.func @transform_3(%arg0: i32) -> (i32, i32) {
    %c0_i32 = arith.constant 0 : i32
    %c0_i32_0 = arith.constant 0 : i32
    %c0_i32_1 = arith.constant 0 : i32
    return %c0_i32, %c0_i32_0 : i32, i32
  }
  func.func @transform_4(%arg0: i32) -> (i32, i32) {
    %c0_i32 = arith.constant 0 : i32
    %c0_i32_0 = arith.constant 0 : i32
    %c0_i32_1 = arith.constant 0 : i32
    return %c0_i32, %c0_i32_0 : i32, i32
  }
  func.func @transform_5(%arg0: i32) -> (i32, i32) {
    %c0_i32 = arith.constant 0 : i32
    %c0_i32_0 = arith.constant 0 : i32
    %c0_i32_1 = arith.constant 0 : i32
    return %c0_i32, %c0_i32_0 : i32, i32
  }
  func.func @transform_6(%arg0: i32) -> (i32, i32) {
    %c0_i32 = arith.constant 0 : i32
    %c0_i32_0 = arith.constant 0 : i32
    %c0_i32_1 = arith.constant 0 : i32
    return %c0_i32, %c0_i32_0 : i32, i32
  }
  func.func @transform_7(%arg0: i32) -> (i32, i32) {
    %c0_i32 = arith.constant 0 : i32
    %c0_i32_0 = arith.constant 0 : i32
    return %arg0, %c0_i32 : i32, i32
  }
}

</mosaic_0001>

<llo_original>
// kernel: tpu_custom_call.1
$region0: #{tpu_custom_call.1}
  #allocation0 [shape = 'u32[]', space=smem, size = 0x4, offset = 0x4, fixed_abs, tag = 'smem constant byte address 0x4 - core index']
  #allocation1 [shape = 'u32[144,128]{1,0:T(1,128)}', space=vmem, size = 0x12000, scoped, tag = 'internal scratch']
  %s0 = inlined_call_operand.hbm [shape: f32[16,16], index: 0, kind: input, shape index: {}]
  %s1 = inlined_call_operand.hbm [shape: bf16[16,128], index: 1, kind: input, shape index: {}]
  %s2 = inlined_call_operand.vmem [shape: bf16[1,128], index: 2, kind: input, shape index: {}]
  %s3 = inlined_call_operand.hbm [shape: bf16[128,128], index: 3, kind: input, shape index: {}]
  %s4 = inlined_call_operand.vmem [shape: bf16[1,128], index: 4, kind: input, shape index: {}]
  %s5 = inlined_call_operand.hbm [shape: bf16[128,128], index: 5, kind: input, shape index: {}]
  %s6 = inlined_call_operand.vmem [shape: f32[1,128], index: 6, kind: input, shape index: {}]
  %s7 = inlined_call_operand.hbm [shape: bf16[16,128], index: 7, kind: output, shape index: {}]
  %s8 = sld [smem:[#allocation0]]
  $region54: #{tpu_custom_call.1} parent=0
    _
  %s10 = ssub.s32 1, %s8
  %s11 = scalar_select 0, %s10, %s8
  $region1: #{tpu_custom_call.1} parent=0
    #allocation2 [shape = 'u8[8192]{0}', space=vmem, size = 0x2000, scoped, tag = 'input window, operand 0, single buffered']
    #allocation3 [shape = 's32[1]{0}', space=sflag, size = 0x4, scoped, tag = 'scoped memory for tpu_custom_call.1']
    #allocation4 [shape = 's32[1]{0}', space=sflag, size = 0x4, scoped, tag = 'scoped memory for tpu_custom_call.1']
    #allocation5 [shape = 'u8[4096]{0}', space=vmem, size = 0x1000, scoped, tag = 'input window, operand 1, single buffered']
    #allocation6 [shape = 's32[1]{0}', space=sflag, size = 0x4, scoped, tag = 'scoped memory for tpu_custom_call.1']
    #allocation7 [shape = 'u8[32768]{0}', space=vmem, size = 0x8000, scoped, tag = 'input window, operand 3, single buffered']
    #allocation8 [shape = 'u8[32768]{0}', space=vmem, size = 0x8000, scoped, tag = 'input window, operand 5, single buffered']
    #allocation9 [shape = 's32[1]{0}', space=sflag, size = 0x4, scoped, tag = 'scoped memory for tpu_custom_call.1']
    #allocation10 [shape = 'u8[4096]{0}', space=vmem, size = 0x1000, scoped, tag = 'output window, operand 0, single buffered']
    %12 = vsyncpa [#allocation3], 0
    %13 = vsyncpa [#allocation6], 0
    %14 = vsyncpa [#allocation9], 0
    %15 = vsyncpa [#allocation4], 0
    // Predicated region
    $region2: #{tpu_custom_call.1} parent=1 // pred_check
      _
    $region3: #{tpu_custom_call.1} parent=1 // pred_check_branch
      %17 = sbr.rel (0) target = $region5
    $region4: #{tpu_custom_call.1} parent=1 // pred_region
      %s19 = ssub.s32 256, 256
      %20 = vsyncadd [#allocation3], %s19
      %s21 = sshll.u32 [#allocation2], 4
      %s22 = int_to_ptr.vmem [resolvable:$true] %s21
      %27 = dma.hbm_to_vmem [thread:$0]  %s0, 256, %s22, [#allocation3], 128, 128, 8
    $region5: #{tpu_custom_call.1} parent=1 // pred_fallthru
      _
    // Predicated region
    $region6: #{tpu_custom_call.1} parent=1 // pred_check
      _
    $region7: #{tpu_custom_call.1} parent=1 // pred_check_branch
      %29 = sbr.rel (0) target = $region9
    $region8: #{tpu_custom_call.1} parent=1 // pred_region
      %s31 = ssub.s32 128, 128
      %32 = vsyncadd [#allocation6], %s31
      %s33 = sshll.u32 [#allocation5], 4
      %s34 = int_to_ptr.vmem [resolvable:$true] %s33
      %39 = dma.hbm_to_vmem [thread:$0]  %s1, 128, %s34, [#allocation6], 64, 64, 4
    $region9: #{tpu_custom_call.1} parent=1 // pred_fallthru
      _
    // Predicated region
    $region10: #{tpu_custom_call.1} parent=1 // pred_check
      _
    $region11: #{tpu_custom_call.1} parent=1 // pred_check_branch
      %41 = sbr.rel (0) target = $region13
    $region12: #{tpu_custom_call.1} parent=1 // pred_region
      _
    $region13: #{tpu_custom_call.1} parent=1 // pred_fallthru
      _
    // Predicated region
    $region14: #{tpu_custom_call.1} parent=1 // pred_check
      _
    $region15: #{tpu_custom_call.1} parent=1 // pred_check_branch
      %43 = sbr.rel (0) target = $region17
    $region16: #{tpu_custom_call.1} parent=1 // pred_region
      %s45 = ssub.s32 1024, 1024
      %46 = vsyncadd [#allocation6], %s45
      %s47 = sshll.u32 [#allocation7], 4
      %s48 = int_to_ptr.vmem [resolvable:$true] %s47
      %53 = dma.hbm_to_vmem [thread:$0]  %s3, 1024, %s48, [#allocation6], 64, 64, 4
    $region17: #{tpu_custom_call.1} parent=1 // pred_fallthru
      _
    // Predicated region
    $region18: #{tpu_custom_call.1} parent=1 // pred_check
      _
    $region19: #{tpu_custom_call.1} parent=1 // pred_check_branch
      %55 = sbr.rel (0) target = $region21
    $region20: #{tpu_custom_call.1} parent=1 // pred_region
      _
    $region21: #{tpu_custom_call.1} parent=1 // pred_fallthru
      _
    // Predicated region
    $region22: #{tpu_custom_call.1} parent=1 // pred_check
      _
    $region23: #{tpu_custom_call.1} parent=1 // pred_check_branch
      %57 = sbr.rel (0) target = $region25
    $region24: #{tpu_custom_call.1} parent=1 // pred_region
      %s59 = ssub.s32 1024, 1024
      %60 = vsyncadd [#allocation9], %s59
      %s61 = sshll.u32 [#allocation8], 4
      %s62 = int_to_ptr.vmem [resolvable:$true] %s61
      %67 = dma.hbm_to_vmem [thread:$0]  %s5, 1024, %s62, [#allocation9], 64, 64, 4
    $region25: #{tpu_custom_call.1} parent=1 // pred_fallthru
      _
    // Predicated region
    $region26: #{tpu_custom_call.1} parent=1 // pred_check
      _
    $region27: #{tpu_custom_call.1} parent=1 // pred_check_branch
      %69 = sbr.rel (0) target = $region29
    $region28: #{tpu_custom_call.1} parent=1 // pred_region
      _
    $region29: #{tpu_custom_call.1} parent=1 // pred_fallthru
      _
    // Predicated region
    $region30: #{tpu_custom_call.1} parent=1 // pred_check
      _
    $region31: #{tpu_custom_call.1} parent=1 // pred_check_branch
      %71 = sbr.rel (0) target = $region33
    $region32: #{tpu_custom_call.1} parent=1 // pred_region
      %72 = dma.done [#allocation3], 256
    $region33: #{tpu_custom_call.1} parent=1 // pred_fallthru
      _
    // Predicated region
    $region34: #{tpu_custom_call.1} parent=1 // pred_check
      _
    $region35: #{tpu_custom_call.1} parent=1 // pred_check_branch
      %74 = sbr.rel (0) target = $region37
    $region36: #{tpu_custom_call.1} parent=1 // pred_region
      %75 = dma.done [#allocation6], 128
    $region37: #{tpu_custom_call.1} parent=1 // pred_fallthru
      _
    // Predicated region
    $region38: #{tpu_custom_call.1} parent=1 // pred_check
      _
    $region39: #{tpu_custom_call.1} parent=1 // pred_check_branch
      %77 = sbr.rel (0) target = $region41
    $region40: #{tpu_custom_call.1} parent=1 // pred_region
      %78 = dma.done [#allocation6], 1024
    $region41: #{tpu_custom_call.1} parent=1 // pred_fallthru
      _
    // Predicated region
    $region42: #{tpu_custom_call.1} parent=1 // pred_check
      _
    $region43: #{tpu_custom_call.1} parent=1 // pred_check_branch
      %80 = sbr.rel (0) target = $region45
    $region44: #{tpu_custom_call.1} parent=1 // pred_region
      %81 = dma.done [#allocation9], 1024
    $region45: #{tpu_custom_call.1} parent=1 // pred_fallthru
      _
    %v83 = vld [vmem:[#allocation2] sm:$0xff]
    %v84 = vld [vmem:[#allocation2 + $0x8] sm:$0xff]
    %v85 = vpack.c.bf16 %v84, %v83
    %v86 = vld [vmem:[#allocation5] sm:$0xf]
    %v87 = vld [vmem:[#allocation5 + $0x4] sm:$0xf]
    %v90 = vunpack.c.l.b16 %v86
    %v91 = vunpack.c.l.b16 %v87
    %v92 = vpack.c.b16 %v91, %v90
    %vm94 = vcmask 130048
    %v96 = vsel %vm94, %v85, 0
    %98 = vmatprep.subr.bf16.mxu0 0
    %99 = vmatpush1.bf16.msra.mxu0 0
    %100 = vmatprep.subr.bf16.mxu0 0
    %101 = vmatpush1.bf16.msra.mxu0 0
    %102 = vmatprep.subr.bf16.mxu0 0
    %103 = vmatpush1.bf16.msra.mxu0 0
    %104 = vmatprep.subr.bf16.mxu0 0
    %105 = vmatpush1.bf16.msra.mxu0 0
    %106 = vmatprep.subr.bf16.mxu0 0
    %107 = vmatpush1.bf16.msra.mxu0 0
    %108 = vmatprep.subr.bf16.mxu0 0
    %109 = vmatpush1.bf16.msra.mxu0 0
    %110 = vmatprep.subr.bf16.mxu0 0
    %111 = vmatpush1.bf16.msra.mxu0 0
    %112 = vmatprep.subr.bf16.mxu0 0
    %113 = vmatpush1.bf16.msra.mxu0 %v92
    %114 = vmatprep.subr.bf16.mxu0 0
    %115 = vmatpush2.bf16.msra.mxu0 0
    %116 = vmatprep.subr.bf16.mxu0 0
    %117 = vmatpush2.bf16.msra.mxu0 0
    %118 = vmatprep.subr.bf16.mxu0 0
    %119 = vmatpush2.bf16.msra.mxu0 0
    %120 = vmatprep.subr.bf16.mxu0 0
    %121 = vmatpush2.bf16.msra.mxu0 0
    %122 = vmatprep.subr.bf16.mxu0 0
    %123 = vmatpush2.bf16.msra.mxu0 0
    %124 = vmatprep.subr.bf16.mxu0 0
    %125 = vmatpush2.bf16.msra.mxu0 0
    %126 = vmatprep.subr.bf16.mxu0 0
    %127 = vmatpush2.bf16.msra.mxu0 0
    %128 = vmatprep.subr.bf16.mxu0 0
    %129 = vmatpush2.bf16.msra.mxu0 0
    %130 = vmatprep.mubr.bf16.mxu0 0
    %131 = vmatmul.mubr.bf16.gmra.mxu0 %v96
    %v132 = vpop.f32.mrf.mxu0
    %v133 = vadd.f32 0.0, %v132
    %v134 = vpop.f32.mrf.mxu0
    %v135 = vpop.f32.mrf.mxu0
    %v136 = vadd.f32 0.0, %v135
    %v137 = vpop.f32.mrf.mxu0
    %138 = vdwg.mxu0
    %v139 = vpack.c.bf16 %v136, %v133
    %v140 = vld [vmem:[%s2] sm:$0x1]
    %v142 = vpack.i.b16 %v140, %v140
    %v144 = vlaneseq
    %v145 = vshrl.u32 %v144, 7
    %v146 = vsub.s32 0, %v145
    %v147 = vrot.slane %v142, %v146
    %v148 = vadd.bf16 %v139, %v147
    %v149 = vmax.bf16 %v148, 0
    %v150 = vld [vmem:[#allocation7] sm:$0xf]
    %v151 = vld [vmem:[#allocation7 + $0x4] sm:$0xf]
    %v152 = vld [vmem:[#allocation7 + $0x8] sm:$0xf]
    %v153 = vld [vmem:[#allocation7 + $0xc] sm:$0xf]
    %v154 = vld [vmem:[#allocation7 + $0x10] sm:$0xf]
    %v155 = vld [vmem:[#allocation7 + $0x14] sm:$0xf]
    %v156 = vld [vmem:[#allocation7 + $0x18] sm:$0xf]
    %v157 = vld [vmem:[#allocation7 + $0x1c] sm:$0xf]
    %v158 = vld [vmem:[#allocation7 + $0x20] sm:$0xf]
    %v159 = vld [vmem:[#allocation7 + $0x24] sm:$0xf]
    %v160 = vld [vmem:[#allocation7 + $0x28] sm:$0xf]
    %v161 = vld [vmem:[#allocation7 + $0x2c] sm:$0xf]
    %v162 = vld [vmem:[#allocation7 + $0x30] sm:$0xf]
    %v163 = vld [vmem:[#allocation7 + $0x34] sm:$0xf]
    %v164 = vld [vmem:[#allocation7 + $0x38] sm:$0xf]
    %v165 = vld [vmem:[#allocation7 + $0x3c] sm:$0xf]
    %v166 = vld [vmem:[%s4] sm:$0x1]
    %v183 = vunpack.c.l.b16 %v150
    %v184 = vunpack.c.l.b16 %v151
    %v185 = vunpack.c.l.b16 %v152
    %v186 = vunpack.c.l.b16 %v153
    %v187 = vunpack.c.l.b16 %v154
    %v188 = vunpack.c.l.b16 %v155
    %v189 = vunpack.c.l.b16 %v156
    %v190 = vunpack.c.l.b16 %v157
    %v191 = vunpack.c.l.b16 %v158
    %v192 = vunpack.c.l.b16 %v159
    %v193 = vunpack.c.l.b16 %v160
    %v194 = vunpack.c.l.b16 %v161
    %v195 = vunpack.c.l.b16 %v162
    %v196 = vunpack.c.l.b16 %v163
    %v197 = vunpack.c.l.b16 %v164
    %v198 = vunpack.c.l.b16 %v165
    %v199 = vpack.c.b16 %v184, %v183
    %v200 = vpack.c.b16 %v186, %v185
    %v201 = vpack.c.b16 %v188, %v187
    %v202 = vpack.c.b16 %v190, %v189
    %v203 = vpack.c.b16 %v192, %v191
    %v204 = vpack.c.b16 %v194, %v193
    %v205 = vpack.c.b16 %v196, %v195
    %v206 = vpack.c.b16 %v198, %v197
    %215 = vmatprep.subr.bf16.mxu0 0
    %216 = vmatpush1.bf16.msra.mxu0 %v206
    %217 = vmatprep.subr.bf16.mxu0 0
    %218 = vmatpush1.bf16.msra.mxu0 %v205
    %219 = vmatprep.subr.bf16.mxu0 0
    %220 = vmatpush1.bf16.msra.mxu0 %v204
    %221 = vmatprep.subr.bf16.mxu0 0
    %222 = vmatpush1.bf16.msra.mxu0 %v203
    %223 = vmatprep.subr.bf16.mxu0 0
    %224 = vmatpush1.bf16.msra.mxu0 %v202
    %225 = vmatprep.subr.bf16.mxu0 0
    %226 = vmatpush1.bf16.msra.mxu0 %v201
    %227 = vmatprep.subr.bf16.mxu0 0
    %228 = vmatpush1.bf16.msra.mxu0 %v200
    %229 = vmatprep.subr.bf16.mxu0 0
    %230 = vmatpush1.bf16.msra.mxu0 %v199
    %231 = vmatprep.subr.bf16.mxu0 0
    %232 = vmatpush2.bf16.msra.mxu0 0
    %233 = vmatprep.subr.bf16.mxu0 0
    %234 = vmatpush2.bf16.msra.mxu0 0
    %235 = vmatprep.subr.bf16.mxu0 0
    %236 = vmatpush2.bf16.msra.mxu0 0
    %237 = vmatprep.subr.bf16.mxu0 0
    %238 = vmatpush2.bf16.msra.mxu0 0
    %239 = vmatprep.subr.bf16.mxu0 0
    %240 = vmatpush2.bf16.msra.mxu0 0
    %241 = vmatprep.subr.bf16.mxu0 0
    %242 = vmatpush2.bf16.msra.mxu0 0
    %243 = vmatprep.subr.bf16.mxu0 0
    %244 = vmatpush2.bf16.msra.mxu0 0
    %245 = vmatprep.subr.bf16.mxu0 0
    %246 = vmatpush2.bf16.msra.mxu0 0
    %247 = vmatprep.mubr.bf16.mxu0 0
    %248 = vmatmul.mubr.bf16.gmra.mxu0 %v149
    %v249 = vpop.f32.mrf.mxu0
    %v250 = vadd.f32 0.0, %v249
    %v251 = vpop.f32.mrf.mxu0
    %v252 = vpop.f32.mrf.mxu0
    %v253 = vadd.f32 0.0, %v252
    %v254 = vpop.f32.mrf.mxu0
    %255 = vdwg.mxu0
    %v256 = vpack.c.bf16 %v253, %v250
    %v258 = vpack.i.b16 %v166, %v166
    %v260 = vlaneseq
    %v261 = vshrl.u32 %v260, 7
    %v262 = vsub.s32 0, %v261
    %v263 = vrot.slane %v258, %v262
    %v264 = vadd.bf16 %v256, %v263
    %v265 = vmax.bf16 %v264, 0
    %266 = vmatprep.subr.bf16.mxu0 0
    %267 = vmatpush1.bf16.msra.mxu0 %v206
    %268 = vmatprep.subr.bf16.mxu0 0
    %269 = vmatpush1.bf16.msra.mxu0 %v205
    %270 = vmatprep.subr.bf16.mxu0 0
    %271 = vmatpush1.bf16.msra.mxu0 %v204
    %272 = vmatprep.subr.bf16.mxu0 0
    %273 = vmatpush1.bf16.msra.mxu0 %v203
    %274 = vmatprep.subr.bf16.mxu0 0
    %275 = vmatpush1.bf16.msra.mxu0 %v202
    %276 = vmatprep.subr.bf16.mxu0 0
    %277 = vmatpush1.bf16.msra.mxu0 %v201
    %278 = vmatprep.subr.bf16.mxu0 0
    %279 = vmatpush1.bf16.msra.mxu0 %v200
    %280 = vmatprep.subr.bf16.mxu0 0
    %281 = vmatpush1.bf16.msra.mxu0 %v199
    %282 = vmatprep.subr.bf16.mxu0 0
    %283 = vmatpush2.bf16.msra.mxu0 0
    %284 = vmatprep.subr.bf16.mxu0 0
    %285 = vmatpush2.bf16.msra.mxu0 0
    %286 = vmatprep.subr.bf16.mxu0 0
    %287 = vmatpush2.bf16.msra.mxu0 0
    %288 = vmatprep.subr.bf16.mxu0 0
    %289 = vmatpush2.bf16.msra.mxu0 0
    %290 = vmatprep.subr.bf16.mxu0 0
    %291 = vmatpush2.bf16.msra.mxu0 0
    %292 = vmatprep.subr.bf16.mxu0 0
    %293 = vmatpush2.bf16.msra.mxu0 0
    %294 = vmatprep.subr.bf16.mxu0 0
    %295 = vmatpush2.bf16.msra.mxu0 0
    %296 = vmatprep.subr.bf16.mxu0 0
    %297 = vmatpush2.bf16.msra.mxu0 0
    %298 = vmatprep.mubr.bf16.mxu0 0
    %299 = vmatmul.mubr.bf16.gmra.mxu0 %v265
    %v300 = vpop.f32.mrf.mxu0
    %v301 = vadd.f32 0.0, %v300
    %v302 = vpop.f32.mrf.mxu0
    %v303 = vpop.f32.mrf.mxu0
    %v304 = vadd.f32 0.0, %v303
    %v305 = vpop.f32.mrf.mxu0
    %306 = vdwg.mxu0
    %v307 = vpack.c.bf16 %v304, %v301
    %v308 = vadd.bf16 %v307, %v263
    %v309 = vmax.bf16 %v308, 0
    %310 = vmatprep.subr.bf16.mxu0 0
    %311 = vmatpush1.bf16.msra.mxu0 %v206
    %312 = vmatprep.subr.bf16.mxu0 0
    %313 = vmatpush1.bf16.msra.mxu0 %v205
    %314 = vmatprep.subr.bf16.mxu0 0
    %315 = vmatpush1.bf16.msra.mxu0 %v204
    %316 = vmatprep.subr.bf16.mxu0 0
    %317 = vmatpush1.bf16.msra.mxu0 %v203
    %318 = vmatprep.subr.bf16.mxu0 0
    %319 = vmatpush1.bf16.msra.mxu0 %v202
    %320 = vmatprep.subr.bf16.mxu0 0
    %321 = vmatpush1.bf16.msra.mxu0 %v201
    %322 = vmatprep.subr.bf16.mxu0 0
    %323 = vmatpush1.bf16.msra.mxu0 %v200
    %324 = vmatprep.subr.bf16.mxu0 0
    %325 = vmatpush1.bf16.msra.mxu0 %v199
    %326 = vmatprep.subr.bf16.mxu0 0
    %327 = vmatpush2.bf16.msra.mxu0 0
    %328 = vmatprep.subr.bf16.mxu0 0
    %329 = vmatpush2.bf16.msra.mxu0 0
    %330 = vmatprep.subr.bf16.mxu0 0
    %331 = vmatpush2.bf16.msra.mxu0 0
    %332 = vmatprep.subr.bf16.mxu0 0
    %333 = vmatpush2.bf16.msra.mxu0 0
    %334 = vmatprep.subr.bf16.mxu0 0
    %335 = vmatpush2.bf16.msra.mxu0 0
    %336 = vmatprep.subr.bf16.mxu0 0
    %337 = vmatpush2.bf16.msra.mxu0 0
    %338 = vmatprep.subr.bf16.mxu0 0
    %339 = vmatpush2.bf16.msra.mxu0 0
    %340 = vmatprep.subr.bf16.mxu0 0
    %341 = vmatpush2.bf16.msra.mxu0 0
    %342 = vmatprep.mubr.bf16.mxu0 0
    %343 = vmatmul.mubr.bf16.gmra.mxu0 %v309
    %v344 = vpop.f32.mrf.mxu0
    %v345 = vadd.f32 0.0, %v344
    %v346 = vpop.f32.mrf.mxu0
    %v347 = vpop.f32.mrf.mxu0
    %v348 = vadd.f32 0.0, %v347
    %v349 = vpop.f32.mrf.mxu0
    %350 = vdwg.mxu0
    %v351 = vpack.c.bf16 %v348, %v345
    %v352 = vadd.bf16 %v351, %v263
    %v353 = vmax.bf16 %v352, 0
    %v354 = vld [vmem:[#allocation8] sm:$0xf]
    %v355 = vld [vmem:[#allocation8 + $0x4] sm:$0xf]
    %v356 = vld [vmem:[#allocation8 + $0x8] sm:$0xf]
    %v357 = vld [vmem:[#allocation8 + $0xc] sm:$0xf]
    %v358 = vld [vmem:[#allocation8 + $0x10] sm:$0xf]
    %v359 = vld [vmem:[#allocation8 + $0x14] sm:$0xf]
    %v360 = vld [vmem:[#allocation8 + $0x18] sm:$0xf]
    %v361 = vld [vmem:[#allocation8 + $0x1c] sm:$0xf]
    %v362 = vld [vmem:[#allocation8 + $0x20] sm:$0xf]
    %v363 = vld [vmem:[#allocation8 + $0x24] sm:$0xf]
    %v364 = vld [vmem:[#allocation8 + $0x28] sm:$0xf]
    %v365 = vld [vmem:[#allocation8 + $0x2c] sm:$0xf]
    %v366 = vld [vmem:[#allocation8 + $0x30] sm:$0xf]
    %v367 = vld [vmem:[#allocation8 + $0x34] sm:$0xf]
    %v368 = vld [vmem:[#allocation8 + $0x38] sm:$0xf]
    %v369 = vld [vmem:[#allocation8 + $0x3c] sm:$0xf]
    %v370 = vld [vmem:[%s6] sm:$0x1]
    %v372 = vlaneseq
    %v373 = vshrl.u32 %v372, 7
    %v374 = vsub.s32 0, %v373
    %v375 = vrot.slane %v370, %v374
    %v393 = vunpack.c.l.b16 %v354
    %v394 = vunpack.c.l.b16 %v355
    %v395 = vunpack.c.l.b16 %v356
    %v396 = vunpack.c.l.b16 %v357
    %v397 = vunpack.c.l.b16 %v358
    %v398 = vunpack.c.l.b16 %v359
    %v399 = vunpack.c.l.b16 %v360
    %v400 = vunpack.c.l.b16 %v361
    %v401 = vunpack.c.l.b16 %v362
    %v402 = vunpack.c.l.b16 %v363
    %v403 = vunpack.c.l.b16 %v364
    %v404 = vunpack.c.l.b16 %v365
    %v405 = vunpack.c.l.b16 %v366
    %v406 = vunpack.c.l.b16 %v367
    %v407 = vunpack.c.l.b16 %v368
    %v408 = vunpack.c.l.b16 %v369
    %v409 = vpack.c.b16 %v394, %v393
    %v410 = vpack.c.b16 %v396, %v395
    %v411 = vpack.c.b16 %v398, %v397
    %v412 = vpack.c.b16 %v400, %v399
    %v413 = vpack.c.b16 %v402, %v401
    %v414 = vpack.c.b16 %v404, %v403
    %v415 = vpack.c.b16 %v406, %v405
    %v416 = vpack.c.b16 %v408, %v407
    %425 = vmatprep.subr.bf16.mxu0 0
    %426 = vmatpush1.bf16.msra.mxu0 %v416
    %427 = vmatprep.subr.bf16.mxu0 0
    %428 = vmatpush1.bf16.msra.mxu0 %v415
    %429 = vmatprep.subr.bf16.mxu0 0
    %430 = vmatpush1.bf16.msra.mxu0 %v414
    %431 = vmatprep.subr.bf16.mxu0 0
    %432 = vmatpush1.bf16.msra.mxu0 %v413
    %433 = vmatprep.subr.bf16.mxu0 0
    %434 = vmatpush1.bf16.msra.mxu0 %v412
    %435 = vmatprep.subr.bf16.mxu0 0
    %436 = vmatpush1.bf16.msra.mxu0 %v411
    %437 = vmatprep.subr.bf16.mxu0 0
    %438 = vmatpush1.bf16.msra.mxu0 %v410
    %439 = vmatprep.subr.bf16.mxu0 0
    %440 = vmatpush1.bf16.msra.mxu0 %v409
    %441 = vmatprep.subr.bf16.mxu0 0
    %442 = vmatpush2.bf16.msra.mxu0 0
    %443 = vmatprep.subr.bf16.mxu0 0
    %444 = vmatpush2.bf16.msra.mxu0 0
    %445 = vmatprep.subr.bf16.mxu0 0
    %446 = vmatpush2.bf16.msra.mxu0 0
    %447 = vmatprep.subr.bf16.mxu0 0
    %448 = vmatpush2.bf16.msra.mxu0 0
    %449 = vmatprep.subr.bf16.mxu0 0
    %450 = vmatpush2.bf16.msra.mxu0 0
    %451 = vmatprep.subr.bf16.mxu0 0
    %452 = vmatpush2.bf16.msra.mxu0 0
    %453 = vmatprep.subr.bf16.mxu0 0
    %454 = vmatpush2.bf16.msra.mxu0 0
    %455 = vmatprep.subr.bf16.mxu0 0
    %456 = vmatpush2.bf16.msra.mxu0 0
    %457 = vmatprep.mubr.bf16.mxu0 0
    %458 = vmatmul.mubr.bf16.gmra.mxu0 %v353
    %v459 = vpop.f32.mrf.mxu0
    %v460 = vadd.f32 %v375, %v459
    %v461 = vpop.f32.mrf.mxu0
    %v462 = vpop.f32.mrf.mxu0
    %v463 = vadd.f32 %v375, %v462
    %v464 = vpop.f32.mrf.mxu0
    %465 = vdwg.mxu0
    %v466 = vpack.c.bf16 %v463, %v460
    %v468 = vunpack.c.l.b16 %v466
    %v469 = vunpack.c.h.b16 %v466
    %v470 = vpack.c.b16 %v468, %v468
    %v471 = vpack.c.b16 %v469, %v469
    %474 = vst [vmem:[#allocation10] sm:$0xf] %v470
    %475 = vst [vmem:[#allocation10 + $0x4] sm:$0xf] %v471
    // Predicated region
    $region46: #{tpu_custom_call.1} parent=1 // pred_check
      _
    $region47: #{tpu_custom_call.1} parent=1 // pred_check_branch
      %477 = sbr.rel (0) target = $region49
    $region48: #{tpu_custom_call.1} parent=1 // pred_region
      %s479 = ssub.s32 128, 128
      %480 = vsyncadd [#allocation4], %s479
      %s481 = sshll.u32 [#allocation10], 4
      %s482 = int_to_ptr.vmem [resolvable:$true] %s481
      %487 = dma.vmem_to_hbm [thread:$0]  %s482, 128, %s7, [#allocation4], 64, 64, 4
    $region49: #{tpu_custom_call.1} parent=1 // pred_fallthru
      _
    // Predicated region
    $region50: #{tpu_custom_call.1} parent=1 // pred_check
      _
    $region51: #{tpu_custom_call.1} parent=1 // pred_check_branch
      %489 = sbr.rel (0) target = $region53
    $region52: #{tpu_custom_call.1} parent=1 // pred_region
      %490 = dma.done [#allocation4], 128
    $region53: #{tpu_custom_call.1} parent=1 // pred_fallthru
      _
    %491 = vsyncpa [#allocation3], 1
    %492 = vsyncpa [#allocation6], 1
    %493 = vsyncpa [#allocation9], 1
    %494 = vsyncpa [#allocation4], 1

</llo_original>
